<compile_context>
chip_gen: v7x
topology: tpu7x:2x2x1
jax: 0.10.0
libtpu: 0.0.40
codegen_flags: <defaults>
</compile_context>

<pallas_src>
import jax
import jax.numpy as jnp
from jax.experimental import pallas as pl
from jax.experimental.pallas import tpu as pltpu

LEAKY_SLOPE = 0.01  # nn.LeakyReLU default negative_slope


def _round_up(n, m):
    return ((n + m - 1) // m) * m


def _cdiv(a, b):
    return (a + b - 1) // b


def _block_diag(w, pack):
    """(k, n) -> (pack*k, pack*n) block-diagonal matrix with `pack` copies of w."""
    k, n = w.shape
    eye = jnp.eye(pack, dtype=w.dtype)
    return (eye[:, None, :, None] * w[None, :, None, :]).reshape(pack * k, pack * n)


def pack_head_params(w1, b1, w2, b2, *, compute_dtype=jnp.bfloat16):
    """Build the lane-dense packed parameters ONCE (hoisted out of the forward path)."""
    in_size, hid = w1.shape
    out_size = w2.shape[1]
    assert 128 % out_size == 0, "lane packing assumes out_size divides 128"
    pack = 128 // out_size
    w1b = _block_diag(w1, pack).astype(compute_dtype)            # (pack*in, pack*hid)
    w2b = _block_diag(w2, pack).astype(compute_dtype)            # (pack*hid, 128)
    b1t = jnp.tile(jnp.reshape(b1, (1, hid)), (1, pack)).astype(jnp.float32)
    b2t = jnp.tile(jnp.reshape(b2, (1, out_size)), (1, pack)).astype(jnp.float32)
    return {
        "w1b": w1b, "b1t": b1t, "w2b": w2b, "b2t": b2t,
        "pack": pack, "in_size": in_size, "hid": hid, "out_size": out_size,
    }


def head_kernel(x_ref, w1_ref, b1_ref, w2_ref, b2_ref, o_ref):
    # Cast the MXU operand in-kernel; x stays in its stored dtype in HBM.
    xb = x_ref[...].astype(w1_ref.dtype)
    # Layer 1: (packed) Linear + LeakyReLU.  f32 MXU accumulation.
    h = jnp.dot(xb, w1_ref[...], preferred_element_type=jnp.float32) + b1_ref[...]
    h = jnp.maximum(h, LEAKY_SLOPE * h)                          # LeakyReLU (2 VPU ops)
    # Layer 2: (packed) Linear + Identity.  Lane-dense (..., 128) output block.
    y = jnp.dot(h.astype(w2_ref.dtype), w2_ref[...],
                preferred_element_type=jnp.float32) + b2_ref[...]
    o_ref[...] = y.astype(o_ref.dtype)


def head_forward(x, params, *, tb_rows_max=8192, out_dtype=jnp.bfloat16):
    """Forward pass of Head.

    x: (batch, in_size) in any float dtype (read as-is; cast to bf16 in-kernel).
    params: output of pack_head_params.
    Returns (batch, out_size) in out_dtype (bf16 by default; precision is
    bf16-bounded either way because the MXU operands are bf16).
    """
    batch, in_size = x.shape
    pack = params["pack"]
    out_size = params["out_size"]
    assert in_size == params["in_size"]

    # 256-row alignment unit: keeps the packed sublane dim a multiple of 16.
    row_align = pack * 16

    # Pad batch only up to the alignment unit, then choose tile/grid so that
    # (a) tiles are <= tb_rows_max and (b) we get >=2 grid steps when possible
    # (pipelining + v7x dual-TensorCore sharding of the "parallel" axis).
    batch_a = _round_up(max(batch, 1), row_align)
    units_total = batch_a // row_align
    units_per_step_max = max(1, tb_rows_max // row_align)
    n_steps = max(1, _cdiv(units_total, units_per_step_max))
    if units_total >= 2:
        n_steps = max(n_steps, 2)
    units_per_step = _cdiv(units_total, n_steps)
    tb_rows = units_per_step * row_align          # rows of x per grid step
    batch_p = tb_rows * n_steps                   # total padded rows (pad < n_steps*256)

    if batch_p != batch:
        x = jnp.pad(x, ((0, batch_p - batch), (0, 0)))

    # Lane-dense repacking: pure contiguous reshape, no dtype cast in the wrapper.
    x2 = x.reshape(batch_p // pack, pack * in_size)
    tbp = tb_rows // pack                         # packed rows per grid step (mult of 16)

    w1b, b1t, w2b, b2t = params["w1b"], params["b1t"], params["w2b"], params["b2t"]

    packed_out = pl.pallas_call(
        head_kernel,
        out_shape=jax.ShapeDtypeStruct((batch_p // pack, pack * out_size), out_dtype),
        grid=(n_steps,),
        in_specs=[
            # x tile marches along the batch axis.
            pl.BlockSpec((tbp, pack * in_size), lambda i: (i, 0)),
            # Weights / biases: constant block index -> resident in VMEM.
            pl.BlockSpec(w1b.shape, lambda i: (0, 0)),
            pl.BlockSpec(b1t.shape, lambda i: (0, 0)),
            pl.BlockSpec(w2b.shape, lambda i: (0, 0)),
            pl.BlockSpec(b2t.shape, lambda i: (0, 0)),
        ],
        out_specs=pl.BlockSpec((tbp, pack * out_size), lambda i: (i, 0)),
        compiler_params=pltpu.CompilerParams(
            dimension_semantics=("parallel",),    # shard batch axis across v7x TCs
        ),
    )(x2, w1b, b1t, w2b, b2t)

    return packed_out.reshape(batch_p, out_size)[:batch]


def init_head_params(key, in_size, out_size):
    """PyTorch-Linear-like init (uniform +/- 1/sqrt(fan_in)); weights as (in, out)."""
    k1, k2, k3, k4 = jax.random.split(key, 4)
    bound1 = 1.0 / jnp.sqrt(in_size)
    w1 = jax.random.uniform(k1, (in_size, in_size), jnp.float32, -bound1, bound1)
    b1 = jax.random.uniform(k2, (1, in_size), jnp.float32, -bound1, bound1)
    bound2 = 1.0 / jnp.sqrt(in_size)
    w2 = jax.random.uniform(k3, (in_size, out_size), jnp.float32, -bound2, bound2)
    b2 = jax.random.uniform(k4, (1, out_size), jnp.float32, -bound2, bound2)
    return w1, b1, w2, b2


def head_reference(x, w1, b1, w2, b2):
    h = x @ w1 + b1
    h = jnp.where(h > 0, h, LEAKY_SLOPE * h)
    return h @ w2 + b2


if __name__ == "__main__":
    in_size, out_size = 32, 8

    key = jax.random.PRNGKey(0)
    kx, kp, kx2 = jax.random.split(key, 3)
    w1, b1, w2, b2 = init_head_params(kp, in_size, out_size)

    # Packed parameters are built once and reused across forward calls.
    params = pack_head_params(w1, b1, w2, b2)

    # Small batch (single grid step, padded to one 256-row tile internally).
    batch = 8
    x = jax.random.normal(kx, (batch, in_size), jnp.float32)
    out = jax.block_until_ready(head_forward(x, params))
    ref = head_reference(x, w1, b1, w2, b2)
    assert out.shape == (batch, out_size)
    # bf16 MXU operands / bf16 output -> loosened tolerance vs. the f32 reference.
    assert jnp.allclose(out.astype(jnp.float32), ref, atol=5e-2, rtol=5e-2)

    # Ragged batch forcing a multi-step grid (tests pipelined tiling + padding).
    batch2 = 300
    x2 = jax.random.normal(kx2, (batch2, in_size), jnp.float32)
    out2 = jax.block_until_ready(head_forward(x2, params))
    ref2 = head_reference(x2, w1, b1, w2, b2)
    assert out2.shape == (batch2, out_size)
    assert jnp.allclose(out2.astype(jnp.float32), ref2, atol=5e-2, rtol=5e-2)

    # f32-output path still available if downstream requires it.
    out3 = jax.block_until_ready(head_forward(x, params, out_dtype=jnp.float32))
    assert out3.dtype == jnp.float32
    assert jnp.allclose(out3, ref, atol=5e-2, rtol=5e-2)

    print("KERNEL_OK")
</pallas_src>

<mosaic_0001>
module attributes {stable_mosaic.version = 11 : i64} {
  func.func @head_kernel(%arg0: i32, %arg1: memref<16x512xf32, #tpu.memory_space<vmem>>, %arg2: memref<512x512xbf16, #tpu.memory_space<vmem>>, %arg3: memref<1x512xf32, #tpu.memory_space<vmem>>, %arg4: memref<512x128xbf16, #tpu.memory_space<vmem>>, %arg5: memref<1x128xf32, #tpu.memory_space<vmem>>, %arg6: memref<16x128xbf16, #tpu.memory_space<vmem>>) attributes {dimension_semantics = [#tpu.dimension_semantics<parallel>], iteration_bounds = array<i64: 1>, scalar_prefetch = 0 : i64, scratch_operands = 0 : i64, tpu.core_type = #tpu.core_type<tc>, window_params = [{transform_indices = @transform_0, window_bounds = array<i64: 16, 512>}, {pipeline_mode = #tpu.pipeline_mode<synchronous>, transform_indices = @transform_1, window_bounds = array<i64: 512, 512>}, {pipeline_mode = #tpu.pipeline_mode<synchronous>, transform_indices = @transform_2, window_bounds = array<i64: 1, 512>}, {pipeline_mode = #tpu.pipeline_mode<synchronous>, transform_indices = @transform_3, window_bounds = array<i64: 512, 128>}, {pipeline_mode = #tpu.pipeline_mode<synchronous>, transform_indices = @transform_4, window_bounds = array<i64: 1, 128>}, {transform_indices = @transform_5, window_bounds = array<i64: 16, 128>}]} {
    %c0 = arith.constant 0 : index
    %c0_0 = arith.constant 0 : index
    %0 = vector.load %arg1[%c0, %c0_0] : memref<16x512xf32, #tpu.memory_space<vmem>>, vector<16x512xf32>
    %1 = arith.truncf %0 : vector<16x512xf32> to vector<16x512xbf16>
    %c0_1 = arith.constant 0 : index
    %c0_2 = arith.constant 0 : index
    %2 = vector.load %arg2[%c0_1, %c0_2] : memref<512x512xbf16, #tpu.memory_space<vmem>>, vector<512x512xbf16>
    %cst = arith.constant dense<0.000000e+00> : vector<16x512xf32>
    %3 = tpu.matmul %1, %2, %cst {dimension_numbers = #tpu.dot_dimension_numbers<[1], [0], [0], [1], [0, 0, 1, 1], [], []>} : vector<16x512xbf16>, vector<512x512xbf16>, vector<16x512xf32> -> vector<16x512xf32>
    %c0_3 = arith.constant 0 : index
    %c0_4 = arith.constant 0 : index
    %4 = vector.load %arg3[%c0_3, %c0_4] : memref<1x512xf32, #tpu.memory_space<vmem>>, vector<1x512xf32>
    %5 = vector.broadcast %4 : vector<1x512xf32> to vector<16x512xf32>
    %6 = arith.addf %3, %5 : vector<16x512xf32>
    %cst_5 = arith.constant 0.00999999977 : f32
    %7 = vector.broadcast %cst_5 : f32 to vector<16x512xf32>
    %8 = arith.mulf %7, %6 : vector<16x512xf32>
    %9 = arith.maximumf %6, %8 : vector<16x512xf32>
    %10 = arith.truncf %9 : vector<16x512xf32> to vector<16x512xbf16>
    %c0_6 = arith.constant 0 : index
    %c0_7 = arith.constant 0 : index
    %11 = vector.load %arg4[%c0_6, %c0_7] : memref<512x128xbf16, #tpu.memory_space<vmem>>, vector<512x128xbf16>
    %cst_8 = arith.constant dense<0.000000e+00> : vector<16x128xf32>
    %12 = tpu.matmul %10, %11, %cst_8 {dimension_numbers = #tpu.dot_dimension_numbers<[1], [0], [0], [1], [0, 0, 1, 1], [], []>} : vector<16x512xbf16>, vector<512x128xbf16>, vector<16x128xf32> -> vector<16x128xf32>
    %c0_9 = arith.constant 0 : index
    %c0_10 = arith.constant 0 : index
    %13 = vector.load %arg5[%c0_9, %c0_10] : memref<1x128xf32, #tpu.memory_space<vmem>>, vector<1x128xf32>
    %14 = vector.broadcast %13 : vector<1x128xf32> to vector<16x128xf32>
    %15 = arith.addf %12, %14 : vector<16x128xf32>
    %16 = arith.truncf %15 : vector<16x128xf32> to vector<16x128xbf16>
    %c0_11 = arith.constant 0 : index
    %c0_12 = arith.constant 0 : index
    %17 = vector.load %arg6[%c0_11, %c0_12] : memref<16x128xbf16, #tpu.memory_space<vmem>>, vector<16x128xbf16>
    tpu.vector_store %arg6[%c0_11, %c0_12], %16 {strides = array<i32>} : memref<16x128xbf16, #tpu.memory_space<vmem>>, vector<16x128xbf16>,
    return
  }
  func.func @transform_0(%arg0: i32) -> (i32, i32) {
    %c0_i32 = arith.constant 0 : i32
    %c0_i32_0 = arith.constant 0 : i32
    return %arg0, %c0_i32 : i32, i32
  }
  func.func @transform_1(%arg0: i32) -> (i32, i32) {
    %c0_i32 = arith.constant 0 : i32
    %c0_i32_0 = arith.constant 0 : i32
    %c0_i32_1 = arith.constant 0 : i32
    return %c0_i32, %c0_i32_0 : i32, i32
  }
  func.func @transform_2(%arg0: i32) -> (i32, i32) {
    %c0_i32 = arith.constant 0 : i32
    %c0_i32_0 = arith.constant 0 : i32
    %c0_i32_1 = arith.constant 0 : i32
    return %c0_i32, %c0_i32_0 : i32, i32
  }
  func.func @transform_3(%arg0: i32) -> (i32, i32) {
    %c0_i32 = arith.constant 0 : i32
    %c0_i32_0 = arith.constant 0 : i32
    %c0_i32_1 = arith.constant 0 : i32
    return %c0_i32, %c0_i32_0 : i32, i32
  }
  func.func @transform_4(%arg0: i32) -> (i32, i32) {
    %c0_i32 = arith.constant 0 : i32
    %c0_i32_0 = arith.constant 0 : i32
    %c0_i32_1 = arith.constant 0 : i32
    return %c0_i32, %c0_i32_0 : i32, i32
  }
  func.func @transform_5(%arg0: i32) -> (i32, i32) {
    %c0_i32 = arith.constant 0 : i32
    %c0_i32_0 = arith.constant 0 : i32
    return %arg0, %c0_i32 : i32, i32
  }
}

</mosaic_0001>

<llo_original>
// kernel: tpu_custom_call.1
$region0: #{tpu_custom_call.1}
  #allocation0 [shape = 'u32[]', space=smem, size = 0x4, offset = 0x4, fixed_abs, tag = 'smem constant byte address 0x4 - core index']
  #allocation1 [shape = 'u32[144,128]{1,0:T(1,128)}', space=vmem, size = 0x12000, scoped, tag = 'internal scratch']
  %s0 = inlined_call_operand.hbm [shape: f32[16,512], index: 0, kind: input, shape index: {}]
  %s1 = inlined_call_operand.hbm [shape: bf16[512,512], index: 1, kind: input, shape index: {}]
  %s2 = inlined_call_operand.vmem [shape: f32[1,512], index: 2, kind: input, shape index: {}]
  %s3 = inlined_call_operand.hbm [shape: bf16[512,128], index: 3, kind: input, shape index: {}]
  %s4 = inlined_call_operand.vmem [shape: f32[1,128], index: 4, kind: input, shape index: {}]
  %s5 = inlined_call_operand.hbm [shape: bf16[16,128], index: 5, kind: output, shape index: {}]
  %s6 = sld [smem:[#allocation0]]
  $region42: #{tpu_custom_call.1} parent=0
    _
  %s8 = ssub.s32 1, %s6
  %s9 = scalar_select 0, %s8, %s6
  $region1: #{tpu_custom_call.1} parent=0
    #allocation2 [shape = 'u8[32768]{0}', space=vmem, size = 0x8000, scoped, tag = 'input window, operand 0, single buffered']
    #allocation3 [shape = 's32[1]{0}', space=sflag, size = 0x4, scoped, tag = 'scoped memory for tpu_custom_call.1']
    #allocation4 [shape = 's32[1]{0}', space=sflag, size = 0x4, scoped, tag = 'scoped memory for tpu_custom_call.1']
    #allocation5 [shape = 'u8[524288]{0}', space=vmem, size = 0x80000, scoped, tag = 'input window, operand 1, single buffered']
    #allocation6 [shape = 's32[1]{0}', space=sflag, size = 0x4, scoped, tag = 'scoped memory for tpu_custom_call.1']
    #allocation7 [shape = 'u8[131072]{0}', space=vmem, size = 0x20000, scoped, tag = 'input window, operand 3, single buffered']
    #allocation8 [shape = 'u8[4096]{0}', space=vmem, size = 0x1000, scoped, tag = 'output window, operand 0, single buffered']
    %10 = vsyncpa [#allocation3], 0
    %11 = vsyncpa [#allocation6], 0
    %12 = vsyncpa [#allocation4], 0
    // Predicated region
    $region2: #{tpu_custom_call.1} parent=1 // pred_check
      _
    $region3: #{tpu_custom_call.1} parent=1 // pred_check_branch
      %14 = sbr.rel (0) target = $region5
    $region4: #{tpu_custom_call.1} parent=1 // pred_region
      %s16 = ssub.s32 1024, 1024
      %17 = vsyncadd [#allocation3], %s16
      %s18 = sshll.u32 [#allocation2], 4
      %s19 = int_to_ptr.vmem [resolvable:$true] %s18
      %24 = dma.hbm_to_vmem [thread:$0]  %s0, 1024, %s19, [#allocation3], 512, 512, 32
    $region5: #{tpu_custom_call.1} parent=1 // pred_fallthru
      _
    // Predicated region
    $region6: #{tpu_custom_call.1} parent=1 // pred_check
      _
    $region7: #{tpu_custom_call.1} parent=1 // pred_check_branch
      %26 = sbr.rel (0) target = $region9
    $region8: #{tpu_custom_call.1} parent=1 // pred_region
      %s28 = ssub.s32 16384, 16384
      %29 = vsyncadd [#allocation6], %s28
      %s30 = sshll.u32 [#allocation5], 4
      %s31 = int_to_ptr.vmem [resolvable:$true] %s30
      %36 = dma.hbm_to_vmem [thread:$0]  %s1, 16384, %s31, [#allocation6], 256, 256, 16
    $region9: #{tpu_custom_call.1} parent=1 // pred_fallthru
      _
    // Predicated region
    $region10: #{tpu_custom_call.1} parent=1 // pred_check
      _
    $region11: #{tpu_custom_call.1} parent=1 // pred_check_branch
      %38 = sbr.rel (0) target = $region13
    $region12: #{tpu_custom_call.1} parent=1 // pred_region
      _
    $region13: #{tpu_custom_call.1} parent=1 // pred_fallthru
      _
    // Predicated region
    $region14: #{tpu_custom_call.1} parent=1 // pred_check
      _
    $region15: #{tpu_custom_call.1} parent=1 // pred_check_branch
      %40 = sbr.rel (0) target = $region17
    $region16: #{tpu_custom_call.1} parent=1 // pred_region
      %s42 = ssub.s32 4096, 4096
      %43 = vsyncadd [#allocation6], %s42
      %s44 = sshll.u32 [#allocation7], 4
      %s45 = int_to_ptr.vmem [resolvable:$true] %s44
      %50 = dma.hbm_to_vmem [thread:$0]  %s3, 4096, %s45, [#allocation6], 64, 64, 4
    $region17: #{tpu_custom_call.1} parent=1 // pred_fallthru
      _
    // Predicated region
    $region18: #{tpu_custom_call.1} parent=1 // pred_check
      _
    $region19: #{tpu_custom_call.1} parent=1 // pred_check_branch
      %52 = sbr.rel (0) target = $region21
    $region20: #{tpu_custom_call.1} parent=1 // pred_region
      _
    $region21: #{tpu_custom_call.1} parent=1 // pred_fallthru
      _
    // Predicated region
    $region22: #{tpu_custom_call.1} parent=1 // pred_check
      _
    $region23: #{tpu_custom_call.1} parent=1 // pred_check_branch
      %54 = sbr.rel (0) target = $region25
    $region24: #{tpu_custom_call.1} parent=1 // pred_region
      %55 = dma.done [#allocation3], 1024
    $region25: #{tpu_custom_call.1} parent=1 // pred_fallthru
      _
    // Predicated region
    $region26: #{tpu_custom_call.1} parent=1 // pred_check
      _
    $region27: #{tpu_custom_call.1} parent=1 // pred_check_branch
      %57 = sbr.rel (0) target = $region29
    $region28: #{tpu_custom_call.1} parent=1 // pred_region
      %58 = dma.done [#allocation6], 16384
    $region29: #{tpu_custom_call.1} parent=1 // pred_fallthru
      _
    // Predicated region
    $region30: #{tpu_custom_call.1} parent=1 // pred_check
      _
    $region31: #{tpu_custom_call.1} parent=1 // pred_check_branch
      %60 = sbr.rel (0) target = $region33
    $region32: #{tpu_custom_call.1} parent=1 // pred_region
      %61 = dma.done [#allocation6], 4096
    $region33: #{tpu_custom_call.1} parent=1 // pred_fallthru
      _
    %v63 = vld [vmem:[#allocation2] sm:$0xff]
    %v64 = vld [vmem:[#allocation2 + $0x8] sm:$0xff]
    %v65 = vld [vmem:[#allocation2 + $0x10] sm:$0xff]
    %v66 = vld [vmem:[#allocation2 + $0x18] sm:$0xff]
    %v67 = vld [vmem:[#allocation2 + $0x20] sm:$0xff]
    %v68 = vld [vmem:[#allocation2 + $0x28] sm:$0xff]
    %v69 = vld [vmem:[#allocation2 + $0x30] sm:$0xff]
    %v70 = vld [vmem:[#allocation2 + $0x38] sm:$0xff]
    %v71 = vpack.c.bf16 %v67, %v63
    %v72 = vpack.c.bf16 %v68, %v64
    %v73 = vpack.c.bf16 %v69, %v65
    %v74 = vpack.c.bf16 %v70, %v66
    %v75 = vld [vmem:[#allocation5] sm:$0xff]
    %v76 = vld [vmem:[#allocation5 + $0x8] sm:$0xff]
    %v77 = vld [vmem:[#allocation5 + $0x10] sm:$0xff]
    %v78 = vld [vmem:[#allocation5 + $0x18] sm:$0xff]
    %v79 = vld [vmem:[#allocation5 + $0x20] sm:$0xff]
    %v80 = vld [vmem:[#allocation5 + $0x28] sm:$0xff]
    %v81 = vld [vmem:[#allocation5 + $0x30] sm:$0xff]
    %v82 = vld [vmem:[#allocation5 + $0x38] sm:$0xff]
    %v83 = vld [vmem:[#allocation5 + $0x40] sm:$0xff]
    %v84 = vld [vmem:[#allocation5 + $0x48] sm:$0xff]
    %v85 = vld [vmem:[#allocation5 + $0x50] sm:$0xff]
    %v86 = vld [vmem:[#allocation5 + $0x58] sm:$0xff]
    %v87 = vld [vmem:[#allocation5 + $0x60] sm:$0xff]
    %v88 = vld [vmem:[#allocation5 + $0x68] sm:$0xff]
    %v89 = vld [vmem:[#allocation5 + $0x70] sm:$0xff]
    %v90 = vld [vmem:[#allocation5 + $0x78] sm:$0xff]
    %v91 = vld [vmem:[#allocation5 + $0x80] sm:$0xff]
    %v92 = vld [vmem:[#allocation5 + $0x88] sm:$0xff]
    %v93 = vld [vmem:[#allocation5 + $0x90] sm:$0xff]
    %v94 = vld [vmem:[#allocation5 + $0x98] sm:$0xff]
    %v95 = vld [vmem:[#allocation5 + $0xa0] sm:$0xff]
    %v96 = vld [vmem:[#allocation5 + $0xa8] sm:$0xff]
    %v97 = vld [vmem:[#allocation5 + $0xb0] sm:$0xff]
    %v98 = vld [vmem:[#allocation5 + $0xb8] sm:$0xff]
    %v99 = vld [vmem:[#allocation5 + $0xc0] sm:$0xff]
    %v100 = vld [vmem:[#allocation5 + $0xc8] sm:$0xff]
    %v101 = vld [vmem:[#allocation5 + $0xd0] sm:$0xff]
    %v102 = vld [vmem:[#allocation5 + $0xd8] sm:$0xff]
    %v103 = vld [vmem:[#allocation5 + $0xe0] sm:$0xff]
    %v104 = vld [vmem:[#allocation5 + $0xe8] sm:$0xff]
    %v105 = vld [vmem:[#allocation5 + $0xf0] sm:$0xff]
    %v106 = vld [vmem:[#allocation5 + $0xf8] sm:$0xff]
    %v107 = vld [vmem:[#allocation5 + $0x100] sm:$0xff]
    %v108 = vld [vmem:[#allocation5 + $0x108] sm:$0xff]
    %v109 = vld [vmem:[#allocation5 + $0x110] sm:$0xff]
    %v110 = vld [vmem:[#allocation5 + $0x118] sm:$0xff]
    %v111 = vld [vmem:[#allocation5 + $0x120] sm:$0xff]
    %v112 = vld [vmem:[#allocation5 + $0x128] sm:$0xff]
    %v113 = vld [vmem:[#allocation5 + $0x130] sm:$0xff]
    %v114 = vld [vmem:[#allocation5 + $0x138] sm:$0xff]
    %v115 = vld [vmem:[#allocation5 + $0x140] sm:$0xff]
    %v116 = vld [vmem:[#allocation5 + $0x148] sm:$0xff]
    %v117 = vld [vmem:[#allocation5 + $0x150] sm:$0xff]
    %v118 = vld [vmem:[#allocation5 + $0x158] sm:$0xff]
    %v119 = vld [vmem:[#allocation5 + $0x160] sm:$0xff]
    %v120 = vld [vmem:[#allocation5 + $0x168] sm:$0xff]
    %v121 = vld [vmem:[#allocation5 + $0x170] sm:$0xff]
    %v122 = vld [vmem:[#allocation5 + $0x178] sm:$0xff]
    %v123 = vld [vmem:[#allocation5 + $0x180] sm:$0xff]
    %v124 = vld [vmem:[#allocation5 + $0x188] sm:$0xff]
    %v125 = vld [vmem:[#allocation5 + $0x190] sm:$0xff]
    %v126 = vld [vmem:[#allocation5 + $0x198] sm:$0xff]
    %v127 = vld [vmem:[#allocation5 + $0x1a0] sm:$0xff]
    %v128 = vld [vmem:[#allocation5 + $0x1a8] sm:$0xff]
    %v129 = vld [vmem:[#allocation5 + $0x1b0] sm:$0xff]
    %v130 = vld [vmem:[#allocation5 + $0x1b8] sm:$0xff]
    %v131 = vld [vmem:[#allocation5 + $0x1c0] sm:$0xff]
    %v132 = vld [vmem:[#allocation5 + $0x1c8] sm:$0xff]
    %v133 = vld [vmem:[#allocation5 + $0x1d0] sm:$0xff]
    %v134 = vld [vmem:[#allocation5 + $0x1d8] sm:$0xff]
    %v135 = vld [vmem:[#allocation5 + $0x1e0] sm:$0xff]
    %v136 = vld [vmem:[#allocation5 + $0x1e8] sm:$0xff]
    %v137 = vld [vmem:[#allocation5 + $0x1f0] sm:$0xff]
    %v138 = vld [vmem:[#allocation5 + $0x1f8] sm:$0xff]
    %v139 = vld [vmem:[#allocation5 + $0x200] sm:$0xff]
    %v140 = vld [vmem:[#allocation5 + $0x208] sm:$0xff]
    %v141 = vld [vmem:[#allocation5 + $0x210] sm:$0xff]
    %v142 = vld [vmem:[#allocation5 + $0x218] sm:$0xff]
    %v143 = vld [vmem:[#allocation5 + $0x220] sm:$0xff]
    %v144 = vld [vmem:[#allocation5 + $0x228] sm:$0xff]
    %v145 = vld [vmem:[#allocation5 + $0x230] sm:$0xff]
    %v146 = vld [vmem:[#allocation5 + $0x238] sm:$0xff]
    %v147 = vld [vmem:[#allocation5 + $0x240] sm:$0xff]
    %v148 = vld [vmem:[#allocation5 + $0x248] sm:$0xff]
    %v149 = vld [vmem:[#allocation5 + $0x250] sm:$0xff]
    %v150 = vld [vmem:[#allocation5 + $0x258] sm:$0xff]
    %v151 = vld [vmem:[#allocation5 + $0x260] sm:$0xff]
    %v152 = vld [vmem:[#allocation5 + $0x268] sm:$0xff]
    %v153 = vld [vmem:[#allocation5 + $0x270] sm:$0xff]
    %v154 = vld [vmem:[#allocation5 + $0x278] sm:$0xff]
    %v155 = vld [vmem:[#allocation5 + $0x280] sm:$0xff]
    %v156 = vld [vmem:[#allocation5 + $0x288] sm:$0xff]
    %v157 = vld [vmem:[#allocation5 + $0x290] sm:$0xff]
    %v158 = vld [vmem:[#allocation5 + $0x298] sm:$0xff]
    %v159 = vld [vmem:[#allocation5 + $0x2a0] sm:$0xff]
    %v160 = vld [vmem:[#allocation5 + $0x2a8] sm:$0xff]
    %v161 = vld [vmem:[#allocation5 + $0x2b0] sm:$0xff]
    %v162 = vld [vmem:[#allocation5 + $0x2b8] sm:$0xff]
    %v163 = vld [vmem:[#allocation5 + $0x2c0] sm:$0xff]
    %v164 = vld [vmem:[#allocation5 + $0x2c8] sm:$0xff]
    %v165 = vld [vmem:[#allocation5 + $0x2d0] sm:$0xff]
    %v166 = vld [vmem:[#allocation5 + $0x2d8] sm:$0xff]
    %v167 = vld [vmem:[#allocation5 + $0x2e0] sm:$0xff]
    %v168 = vld [vmem:[#allocation5 + $0x2e8] sm:$0xff]
    %v169 = vld [vmem:[#allocation5 + $0x2f0] sm:$0xff]
    %v170 = vld [vmem:[#allocation5 + $0x2f8] sm:$0xff]
    %v171 = vld [vmem:[#allocation5 + $0x300] sm:$0xff]
    %v172 = vld [vmem:[#allocation5 + $0x308] sm:$0xff]
    %v173 = vld [vmem:[#allocation5 + $0x310] sm:$0xff]
    %v174 = vld [vmem:[#allocation5 + $0x318] sm:$0xff]
    %v175 = vld [vmem:[#allocation5 + $0x320] sm:$0xff]
    %v176 = vld [vmem:[#allocation5 + $0x328] sm:$0xff]
    %v177 = vld [vmem:[#allocation5 + $0x330] sm:$0xff]
    %v178 = vld [vmem:[#allocation5 + $0x338] sm:$0xff]
    %v179 = vld [vmem:[#allocation5 + $0x340] sm:$0xff]
    %v180 = vld [vmem:[#allocation5 + $0x348] sm:$0xff]
    %v181 = vld [vmem:[#allocation5 + $0x350] sm:$0xff]
    %v182 = vld [vmem:[#allocation5 + $0x358] sm:$0xff]
    %v183 = vld [vmem:[#allocation5 + $0x360] sm:$0xff]
    %v184 = vld [vmem:[#allocation5 + $0x368] sm:$0xff]
    %v185 = vld [vmem:[#allocation5 + $0x370] sm:$0xff]
    %v186 = vld [vmem:[#allocation5 + $0x378] sm:$0xff]
    %v187 = vld [vmem:[#allocation5 + $0x380] sm:$0xff]
    %v188 = vld [vmem:[#allocation5 + $0x388] sm:$0xff]
    %v189 = vld [vmem:[#allocation5 + $0x390] sm:$0xff]
    %v190 = vld [vmem:[#allocation5 + $0x398] sm:$0xff]
    %v191 = vld [vmem:[#allocation5 + $0x3a0] sm:$0xff]
    %v192 = vld [vmem:[#allocation5 + $0x3a8] sm:$0xff]
    %v193 = vld [vmem:[#allocation5 + $0x3b0] sm:$0xff]
    %v194 = vld [vmem:[#allocation5 + $0x3b8] sm:$0xff]
    %v195 = vld [vmem:[#allocation5 + $0x3c0] sm:$0xff]
    %v196 = vld [vmem:[#allocation5 + $0x3c8] sm:$0xff]
    %v197 = vld [vmem:[#allocation5 + $0x3d0] sm:$0xff]
    %v198 = vld [vmem:[#allocation5 + $0x3d8] sm:$0xff]
    %v199 = vld [vmem:[#allocation5 + $0x3e0] sm:$0xff]
    %v200 = vld [vmem:[#allocation5 + $0x3e8] sm:$0xff]
    %v201 = vld [vmem:[#allocation5 + $0x3f0] sm:$0xff]
    %v202 = vld [vmem:[#allocation5 + $0x3f8] sm:$0xff]
    %v203 = vld [vmem:[%s2] sm:$0xf]
    %v205 = vlaneseq
    %v206 = vshrl.u32 %v205, 7
    %v207 = vsub.s32 0, %v206
    %v208 = vrot.slane %v203, %v207
    %v209 = vlaneseq
    %v210 = vshrl.u32 %v209, 7
    %v211 = vsub.s32 1, %v210
    %v212 = vrot.slane %v203, %v211
    %v213 = vlaneseq
    %v214 = vshrl.u32 %v213, 7
    %v215 = vsub.s32 2, %v214
    %v216 = vrot.slane %v203, %v215
    %v217 = vlaneseq
    %v218 = vshrl.u32 %v217, 7
    %v219 = vsub.s32 3, %v218
    %v220 = vrot.slane %v203, %v219
    %v353 = vunpack.c.l.b16 %v75
    %v354 = vunpack.c.h.b16 %v75
    %v355 = vunpack.c.l.b16 %v76
    %v356 = vunpack.c.h.b16 %v76
    %v357 = vunpack.c.l.b16 %v77
    %v358 = vunpack.c.h.b16 %v77
    %v359 = vunpack.c.l.b16 %v78
    %v360 = vunpack.c.h.b16 %v78
    %v361 = vunpack.c.l.b16 %v79
    %v362 = vunpack.c.h.b16 %v79
    %v363 = vunpack.c.l.b16 %v80
    %v364 = vunpack.c.h.b16 %v80
    %v365 = vunpack.c.l.b16 %v81
    %v366 = vunpack.c.h.b16 %v81
    %v367 = vunpack.c.l.b16 %v82
    %v368 = vunpack.c.h.b16 %v82
    %v369 = vunpack.c.l.b16 %v83
    %v370 = vunpack.c.h.b16 %v83
    %v371 = vunpack.c.l.b16 %v84
    %v372 = vunpack.c.h.b16 %v84
    %v373 = vunpack.c.l.b16 %v85
    %v374 = vunpack.c.h.b16 %v85
    %v375 = vunpack.c.l.b16 %v86
    %v376 = vunpack.c.h.b16 %v86
    %v377 = vunpack.c.l.b16 %v87
    %v378 = vunpack.c.h.b16 %v87
    %v379 = vunpack.c.l.b16 %v88
    %v380 = vunpack.c.h.b16 %v88
    %v381 = vunpack.c.l.b16 %v89
    %v382 = vunpack.c.h.b16 %v89
    %v383 = vunpack.c.l.b16 %v90
    %v384 = vunpack.c.h.b16 %v90
    %v385 = vunpack.c.l.b16 %v91
    %v386 = vunpack.c.h.b16 %v91
    %v387 = vunpack.c.l.b16 %v92
    %v388 = vunpack.c.h.b16 %v92
    %v389 = vunpack.c.l.b16 %v93
    %v390 = vunpack.c.h.b16 %v93
    %v391 = vunpack.c.l.b16 %v94
    %v392 = vunpack.c.h.b16 %v94
    %v393 = vunpack.c.l.b16 %v95
    %v394 = vunpack.c.h.b16 %v95
    %v395 = vunpack.c.l.b16 %v96
    %v396 = vunpack.c.h.b16 %v96
    %v397 = vunpack.c.l.b16 %v97
    %v398 = vunpack.c.h.b16 %v97
    %v399 = vunpack.c.l.b16 %v98
    %v400 = vunpack.c.h.b16 %v98
    %v401 = vunpack.c.l.b16 %v99
    %v402 = vunpack.c.h.b16 %v99
    %v403 = vunpack.c.l.b16 %v100
    %v404 = vunpack.c.h.b16 %v100
    %v405 = vunpack.c.l.b16 %v101
    %v406 = vunpack.c.h.b16 %v101
    %v407 = vunpack.c.l.b16 %v102
    %v408 = vunpack.c.h.b16 %v102
    %v409 = vunpack.c.l.b16 %v103
    %v410 = vunpack.c.h.b16 %v103
    %v411 = vunpack.c.l.b16 %v104
    %v412 = vunpack.c.h.b16 %v104
    %v413 = vunpack.c.l.b16 %v105
    %v414 = vunpack.c.h.b16 %v105
    %v415 = vunpack.c.l.b16 %v106
    %v416 = vunpack.c.h.b16 %v106
    %v417 = vunpack.c.l.b16 %v107
    %v418 = vunpack.c.h.b16 %v107
    %v419 = vunpack.c.l.b16 %v108
    %v420 = vunpack.c.h.b16 %v108
    %v421 = vunpack.c.l.b16 %v109
    %v422 = vunpack.c.h.b16 %v109
    %v423 = vunpack.c.l.b16 %v110
    %v424 = vunpack.c.h.b16 %v110
    %v425 = vunpack.c.l.b16 %v111
    %v426 = vunpack.c.h.b16 %v111
    %v427 = vunpack.c.l.b16 %v112
    %v428 = vunpack.c.h.b16 %v112
    %v429 = vunpack.c.l.b16 %v113
    %v430 = vunpack.c.h.b16 %v113
    %v431 = vunpack.c.l.b16 %v114
    %v432 = vunpack.c.h.b16 %v114
    %v433 = vunpack.c.l.b16 %v115
    %v434 = vunpack.c.h.b16 %v115
    %v435 = vunpack.c.l.b16 %v116
    %v436 = vunpack.c.h.b16 %v116
    %v437 = vunpack.c.l.b16 %v117
    %v438 = vunpack.c.h.b16 %v117
    %v439 = vunpack.c.l.b16 %v118
    %v440 = vunpack.c.h.b16 %v118
    %v441 = vunpack.c.l.b16 %v119
    %v442 = vunpack.c.h.b16 %v119
    %v443 = vunpack.c.l.b16 %v120
    %v444 = vunpack.c.h.b16 %v120
    %v445 = vunpack.c.l.b16 %v121
    %v446 = vunpack.c.h.b16 %v121
    %v447 = vunpack.c.l.b16 %v122
    %v448 = vunpack.c.h.b16 %v122
    %v449 = vunpack.c.l.b16 %v123
    %v450 = vunpack.c.h.b16 %v123
    %v451 = vunpack.c.l.b16 %v124
    %v452 = vunpack.c.h.b16 %v124
    %v453 = vunpack.c.l.b16 %v125
    %v454 = vunpack.c.h.b16 %v125
    %v455 = vunpack.c.l.b16 %v126
    %v456 = vunpack.c.h.b16 %v126
    %v457 = vunpack.c.l.b16 %v127
    %v458 = vunpack.c.h.b16 %v127
    %v459 = vunpack.c.l.b16 %v128
    %v460 = vunpack.c.h.b16 %v128
    %v461 = vunpack.c.l.b16 %v129
    %v462 = vunpack.c.h.b16 %v129
    %v463 = vunpack.c.l.b16 %v130
    %v464 = vunpack.c.h.b16 %v130
    %v465 = vunpack.c.l.b16 %v131
    %v466 = vunpack.c.h.b16 %v131
    %v467 = vunpack.c.l.b16 %v132
    %v468 = vunpack.c.h.b16 %v132
    %v469 = vunpack.c.l.b16 %v133
    %v470 = vunpack.c.h.b16 %v133
    %v471 = vunpack.c.l.b16 %v134
    %v472 = vunpack.c.h.b16 %v134
    %v473 = vunpack.c.l.b16 %v135
    %v474 = vunpack.c.h.b16 %v135
    %v475 = vunpack.c.l.b16 %v136
    %v476 = vunpack.c.h.b16 %v136
    %v477 = vunpack.c.l.b16 %v137
    %v478 = vunpack.c.h.b16 %v137
    %v479 = vunpack.c.l.b16 %v138
    %v480 = vunpack.c.h.b16 %v138
    %v481 = vunpack.c.l.b16 %v139
    %v482 = vunpack.c.h.b16 %v139
    %v483 = vunpack.c.l.b16 %v140
    %v484 = vunpack.c.h.b16 %v140
    %v485 = vunpack.c.l.b16 %v141
    %v486 = vunpack.c.h.b16 %v141
    %v487 = vunpack.c.l.b16 %v142
    %v488 = vunpack.c.h.b16 %v142
    %v489 = vunpack.c.l.b16 %v143
    %v490 = vunpack.c.h.b16 %v143
    %v491 = vunpack.c.l.b16 %v144
    %v492 = vunpack.c.h.b16 %v144
    %v493 = vunpack.c.l.b16 %v145
    %v494 = vunpack.c.h.b16 %v145
    %v495 = vunpack.c.l.b16 %v146
    %v496 = vunpack.c.h.b16 %v146
    %v497 = vunpack.c.l.b16 %v147
    %v498 = vunpack.c.h.b16 %v147
    %v499 = vunpack.c.l.b16 %v148
    %v500 = vunpack.c.h.b16 %v148
    %v501 = vunpack.c.l.b16 %v149
    %v502 = vunpack.c.h.b16 %v149
    %v503 = vunpack.c.l.b16 %v150
    %v504 = vunpack.c.h.b16 %v150
    %v505 = vunpack.c.l.b16 %v151
    %v506 = vunpack.c.h.b16 %v151
    %v507 = vunpack.c.l.b16 %v152
    %v508 = vunpack.c.h.b16 %v152
    %v509 = vunpack.c.l.b16 %v153
    %v510 = vunpack.c.h.b16 %v153
    %v511 = vunpack.c.l.b16 %v154
    %v512 = vunpack.c.h.b16 %v154
    %v513 = vunpack.c.l.b16 %v155
    %v514 = vunpack.c.h.b16 %v155
    %v515 = vunpack.c.l.b16 %v156
    %v516 = vunpack.c.h.b16 %v156
    %v517 = vunpack.c.l.b16 %v157
    %v518 = vunpack.c.h.b16 %v157
    %v519 = vunpack.c.l.b16 %v158
    %v520 = vunpack.c.h.b16 %v158
    %v521 = vunpack.c.l.b16 %v159
    %v522 = vunpack.c.h.b16 %v159
    %v523 = vunpack.c.l.b16 %v160
    %v524 = vunpack.c.h.b16 %v160
    %v525 = vunpack.c.l.b16 %v161
    %v526 = vunpack.c.h.b16 %v161
    %v527 = vunpack.c.l.b16 %v162
    %v528 = vunpack.c.h.b16 %v162
    %v529 = vunpack.c.l.b16 %v163
    %v530 = vunpack.c.h.b16 %v163
    %v531 = vunpack.c.l.b16 %v164
    %v532 = vunpack.c.h.b16 %v164
    %v533 = vunpack.c.l.b16 %v165
    %v534 = vunpack.c.h.b16 %v165
    %v535 = vunpack.c.l.b16 %v166
    %v536 = vunpack.c.h.b16 %v166
    %v537 = vunpack.c.l.b16 %v167
    %v538 = vunpack.c.h.b16 %v167
    %v539 = vunpack.c.l.b16 %v168
    %v540 = vunpack.c.h.b16 %v168
    %v541 = vunpack.c.l.b16 %v169
    %v542 = vunpack.c.h.b16 %v169
    %v543 = vunpack.c.l.b16 %v170
    %v544 = vunpack.c.h.b16 %v170
    %v545 = vunpack.c.l.b16 %v171
    %v546 = vunpack.c.h.b16 %v171
    %v547 = vunpack.c.l.b16 %v172
    %v548 = vunpack.c.h.b16 %v172
    %v549 = vunpack.c.l.b16 %v173
    %v550 = vunpack.c.h.b16 %v173
    %v551 = vunpack.c.l.b16 %v174
    %v552 = vunpack.c.h.b16 %v174
    %v553 = vunpack.c.l.b16 %v175
    %v554 = vunpack.c.h.b16 %v175
    %v555 = vunpack.c.l.b16 %v176
    %v556 = vunpack.c.h.b16 %v176
    %v557 = vunpack.c.l.b16 %v177
    %v558 = vunpack.c.h.b16 %v177
    %v559 = vunpack.c.l.b16 %v178
    %v560 = vunpack.c.h.b16 %v178
    %v561 = vunpack.c.l.b16 %v179
    %v562 = vunpack.c.h.b16 %v179
    %v563 = vunpack.c.l.b16 %v180
    %v564 = vunpack.c.h.b16 %v180
    %v565 = vunpack.c.l.b16 %v181
    %v566 = vunpack.c.h.b16 %v181
    %v567 = vunpack.c.l.b16 %v182
    %v568 = vunpack.c.h.b16 %v182
    %v569 = vunpack.c.l.b16 %v183
    %v570 = vunpack.c.h.b16 %v183
    %v571 = vunpack.c.l.b16 %v184
    %v572 = vunpack.c.h.b16 %v184
    %v573 = vunpack.c.l.b16 %v185
    %v574 = vunpack.c.h.b16 %v185
    %v575 = vunpack.c.l.b16 %v186
    %v576 = vunpack.c.h.b16 %v186
    %v577 = vunpack.c.l.b16 %v187
    %v578 = vunpack.c.h.b16 %v187
    %v579 = vunpack.c.l.b16 %v188
    %v580 = vunpack.c.h.b16 %v188
    %v581 = vunpack.c.l.b16 %v189
    %v582 = vunpack.c.h.b16 %v189
    %v583 = vunpack.c.l.b16 %v190
    %v584 = vunpack.c.h.b16 %v190
    %v585 = vunpack.c.l.b16 %v191
    %v586 = vunpack.c.h.b16 %v191
    %v587 = vunpack.c.l.b16 %v192
    %v588 = vunpack.c.h.b16 %v192
    %v589 = vunpack.c.l.b16 %v193
    %v590 = vunpack.c.h.b16 %v193
    %v591 = vunpack.c.l.b16 %v194
    %v592 = vunpack.c.h.b16 %v194
    %v593 = vunpack.c.l.b16 %v195
    %v594 = vunpack.c.h.b16 %v195
    %v595 = vunpack.c.l.b16 %v196
    %v596 = vunpack.c.h.b16 %v196
    %v597 = vunpack.c.l.b16 %v197
    %v598 = vunpack.c.h.b16 %v197
    %v599 = vunpack.c.l.b16 %v198
    %v600 = vunpack.c.h.b16 %v198
    %v601 = vunpack.c.l.b16 %v199
    %v602 = vunpack.c.h.b16 %v199
    %v603 = vunpack.c.l.b16 %v200
    %v604 = vunpack.c.h.b16 %v200
    %v605 = vunpack.c.l.b16 %v201
    %v606 = vunpack.c.h.b16 %v201
    %v607 = vunpack.c.l.b16 %v202
    %v608 = vunpack.c.h.b16 %v202
    %v609 = vpack.c.b16 %v357, %v353
    %v610 = vpack.c.b16 %v358, %v354
    %v611 = vpack.c.b16 %v359, %v355
    %v612 = vpack.c.b16 %v360, %v356
    %v613 = vpack.c.b16 %v365, %v361
    %v614 = vpack.c.b16 %v366, %v362
    %v615 = vpack.c.b16 %v367, %v363
    %v616 = vpack.c.b16 %v368, %v364
    %v617 = vpack.c.b16 %v373, %v369
    %v618 = vpack.c.b16 %v374, %v370
    %v619 = vpack.c.b16 %v375, %v371
    %v620 = vpack.c.b16 %v376, %v372
    %v621 = vpack.c.b16 %v381, %v377
    %v622 = vpack.c.b16 %v382, %v378
    %v623 = vpack.c.b16 %v383, %v379
    %v624 = vpack.c.b16 %v384, %v380
    %v625 = vpack.c.b16 %v389, %v385
    %v626 = vpack.c.b16 %v390, %v386
    %v627 = vpack.c.b16 %v391, %v387
    %v628 = vpack.c.b16 %v392, %v388
    %v629 = vpack.c.b16 %v397, %v393
    %v630 = vpack.c.b16 %v398, %v394
    %v631 = vpack.c.b16 %v399, %v395
    %v632 = vpack.c.b16 %v400, %v396
    %v633 = vpack.c.b16 %v405, %v401
    %v634 = vpack.c.b16 %v406, %v402
    %v635 = vpack.c.b16 %v407, %v403
    %v636 = vpack.c.b16 %v408, %v404
    %v637 = vpack.c.b16 %v413, %v409
    %v638 = vpack.c.b16 %v414, %v410
    %v639 = vpack.c.b16 %v415, %v411
    %v640 = vpack.c.b16 %v416, %v412
    %v641 = vpack.c.b16 %v421, %v417
    %v642 = vpack.c.b16 %v422, %v418
    %v643 = vpack.c.b16 %v423, %v419
    %v644 = vpack.c.b16 %v424, %v420
    %v645 = vpack.c.b16 %v429, %v425
    %v646 = vpack.c.b16 %v430, %v426
    %v647 = vpack.c.b16 %v431, %v427
    %v648 = vpack.c.b16 %v432, %v428
    %v649 = vpack.c.b16 %v437, %v433
    %v650 = vpack.c.b16 %v438, %v434
    %v651 = vpack.c.b16 %v439, %v435
    %v652 = vpack.c.b16 %v440, %v436
    %v653 = vpack.c.b16 %v445, %v441
    %v654 = vpack.c.b16 %v446, %v442
    %v655 = vpack.c.b16 %v447, %v443
    %v656 = vpack.c.b16 %v448, %v444
    %v657 = vpack.c.b16 %v453, %v449
    %v658 = vpack.c.b16 %v454, %v450
    %v659 = vpack.c.b16 %v455, %v451
    %v660 = vpack.c.b16 %v456, %v452
    %v661 = vpack.c.b16 %v461, %v457
    %v662 = vpack.c.b16 %v462, %v458
    %v663 = vpack.c.b16 %v463, %v459
    %v664 = vpack.c.b16 %v464, %v460
    %v665 = vpack.c.b16 %v469, %v465
    %v666 = vpack.c.b16 %v470, %v466
    %v667 = vpack.c.b16 %v471, %v467
    %v668 = vpack.c.b16 %v472, %v468
    %v669 = vpack.c.b16 %v477, %v473
    %v670 = vpack.c.b16 %v478, %v474
    %v671 = vpack.c.b16 %v479, %v475
    %v672 = vpack.c.b16 %v480, %v476
    %v673 = vpack.c.b16 %v485, %v481
    %v674 = vpack.c.b16 %v486, %v482
    %v675 = vpack.c.b16 %v487, %v483
    %v676 = vpack.c.b16 %v488, %v484
    %v677 = vpack.c.b16 %v493, %v489
    %v678 = vpack.c.b16 %v494, %v490
    %v679 = vpack.c.b16 %v495, %v491
    %v680 = vpack.c.b16 %v496, %v492
    %v681 = vpack.c.b16 %v501, %v497
    %v682 = vpack.c.b16 %v502, %v498
    %v683 = vpack.c.b16 %v503, %v499
    %v684 = vpack.c.b16 %v504, %v500
    %v685 = vpack.c.b16 %v509, %v505
    %v686 = vpack.c.b16 %v510, %v506
    %v687 = vpack.c.b16 %v511, %v507
    %v688 = vpack.c.b16 %v512, %v508
    %v689 = vpack.c.b16 %v517, %v513
    %v690 = vpack.c.b16 %v518, %v514
    %v691 = vpack.c.b16 %v519, %v515
    %v692 = vpack.c.b16 %v520, %v516
    %v693 = vpack.c.b16 %v525, %v521
    %v694 = vpack.c.b16 %v526, %v522
    %v695 = vpack.c.b16 %v527, %v523
    %v696 = vpack.c.b16 %v528, %v524
    %v697 = vpack.c.b16 %v533, %v529
    %v698 = vpack.c.b16 %v534, %v530
    %v699 = vpack.c.b16 %v535, %v531
    %v700 = vpack.c.b16 %v536, %v532
    %v701 = vpack.c.b16 %v541, %v537
    %v702 = vpack.c.b16 %v542, %v538
    %v703 = vpack.c.b16 %v543, %v539
    %v704 = vpack.c.b16 %v544, %v540
    %v705 = vpack.c.b16 %v549, %v545
    %v706 = vpack.c.b16 %v550, %v546
    %v707 = vpack.c.b16 %v551, %v547
    %v708 = vpack.c.b16 %v552, %v548
    %v709 = vpack.c.b16 %v557, %v553
    %v710 = vpack.c.b16 %v558, %v554
    %v711 = vpack.c.b16 %v559, %v555
    %v712 = vpack.c.b16 %v560, %v556
    %v713 = vpack.c.b16 %v565, %v561
    %v714 = vpack.c.b16 %v566, %v562
    %v715 = vpack.c.b16 %v567, %v563
    %v716 = vpack.c.b16 %v568, %v564
    %v717 = vpack.c.b16 %v573, %v569
    %v718 = vpack.c.b16 %v574, %v570
    %v719 = vpack.c.b16 %v575, %v571
    %v720 = vpack.c.b16 %v576, %v572
    %v721 = vpack.c.b16 %v581, %v577
    %v722 = vpack.c.b16 %v582, %v578
    %v723 = vpack.c.b16 %v583, %v579
    %v724 = vpack.c.b16 %v584, %v580
    %v725 = vpack.c.b16 %v589, %v585
    %v726 = vpack.c.b16 %v590, %v586
    %v727 = vpack.c.b16 %v591, %v587
    %v728 = vpack.c.b16 %v592, %v588
    %v729 = vpack.c.b16 %v597, %v593
    %v730 = vpack.c.b16 %v598, %v594
    %v731 = vpack.c.b16 %v599, %v595
    %v732 = vpack.c.b16 %v600, %v596
    %v733 = vpack.c.b16 %v605, %v601
    %v734 = vpack.c.b16 %v606, %v602
    %v735 = vpack.c.b16 %v607, %v603
    %v736 = vpack.c.b16 %v608, %v604
    %865 = vmatprep.subr.bf16.mxu0 %v610
    %866 = vmatpush1.bf16.msra.mxu0 %v609
    %867 = vmatprep.subr.bf16.mxu0 %v614
    %868 = vmatpush1.bf16.msra.mxu0 %v613
    %869 = vmatprep.subr.bf16.mxu0 %v618
    %870 = vmatpush1.bf16.msra.mxu0 %v617
    %871 = vmatprep.subr.bf16.mxu0 %v622
    %872 = vmatpush1.bf16.msra.mxu0 %v621
    %873 = vmatprep.subr.bf16.mxu0 %v626
    %874 = vmatpush1.bf16.msra.mxu0 %v625
    %875 = vmatprep.subr.bf16.mxu0 %v630
    %876 = vmatpush1.bf16.msra.mxu0 %v629
    %877 = vmatprep.subr.bf16.mxu0 %v634
    %878 = vmatpush1.bf16.msra.mxu0 %v633
    %879 = vmatprep.subr.bf16.mxu0 %v638
    %880 = vmatpush1.bf16.msra.mxu0 %v637
    %881 = vmatprep.subr.bf16.mxu0 %v642
    %882 = vmatpush1.bf16.msra.mxu0 %v641
    %883 = vmatprep.subr.bf16.mxu0 %v646
    %884 = vmatpush1.bf16.msra.mxu0 %v645
    %885 = vmatprep.subr.bf16.mxu0 %v650
    %886 = vmatpush1.bf16.msra.mxu0 %v649
    %887 = vmatprep.subr.bf16.mxu0 %v654
    %888 = vmatpush1.bf16.msra.mxu0 %v653
    %889 = vmatprep.subr.bf16.mxu0 %v658
    %890 = vmatpush1.bf16.msra.mxu0 %v657
    %891 = vmatprep.subr.bf16.mxu0 %v662
    %892 = vmatpush1.bf16.msra.mxu0 %v661
    %893 = vmatprep.subr.bf16.mxu0 %v666
    %894 = vmatpush1.bf16.msra.mxu0 %v665
    %895 = vmatprep.subr.bf16.mxu0 %v670
    %896 = vmatpush1.bf16.msra.mxu0 %v669
    %897 = vmatprep.mubr.bf16.mxu0 %v72
    %898 = vmatmul.mubr.bf16.gmra.mrb[0].mxu0 %v71
    %v899 = vpop.f32.mrb[0].mxu0
    %v900 = vadd.f32 %v208, %v899
    %v901 = vpop.f32.mrb[0].mxu0
    %v902 = vadd.f32 %v212, %v901
    %v903 = vpop.f32.mrb[0].mxu0
    %v904 = vadd.f32 %v208, %v903
    %v905 = vpop.f32.mrb[0].mxu0
    %v906 = vadd.f32 %v212, %v905
    %907 = vdwg.mxu0
    %908 = vmatprep.subr.bf16.mxu0 %v674
    %909 = vmatpush1.bf16.msra.mxu0 %v673
    %910 = vmatprep.subr.bf16.mxu0 %v678
    %911 = vmatpush1.bf16.msra.mxu0 %v677
    %912 = vmatprep.subr.bf16.mxu0 %v682
    %913 = vmatpush1.bf16.msra.mxu0 %v681
    %914 = vmatprep.subr.bf16.mxu0 %v686
    %915 = vmatpush1.bf16.msra.mxu0 %v685
    %916 = vmatprep.subr.bf16.mxu0 %v690
    %917 = vmatpush1.bf16.msra.mxu0 %v689
    %918 = vmatprep.subr.bf16.mxu0 %v694
    %919 = vmatpush1.bf16.msra.mxu0 %v693
    %920 = vmatprep.subr.bf16.mxu0 %v698
    %921 = vmatpush1.bf16.msra.mxu0 %v697
    %922 = vmatprep.subr.bf16.mxu0 %v702
    %923 = vmatpush1.bf16.msra.mxu0 %v701
    %924 = vmatprep.subr.bf16.mxu0 %v706
    %925 = vmatpush1.bf16.msra.mxu0 %v705
    %926 = vmatprep.subr.bf16.mxu0 %v710
    %927 = vmatpush1.bf16.msra.mxu0 %v709
    %928 = vmatprep.subr.bf16.mxu0 %v714
    %929 = vmatpush1.bf16.msra.mxu0 %v713
    %930 = vmatprep.subr.bf16.mxu0 %v718
    %931 = vmatpush1.bf16.msra.mxu0 %v717
    %932 = vmatprep.subr.bf16.mxu0 %v722
    %933 = vmatpush1.bf16.msra.mxu0 %v721
    %934 = vmatprep.subr.bf16.mxu0 %v726
    %935 = vmatpush1.bf16.msra.mxu0 %v725
    %936 = vmatprep.subr.bf16.mxu0 %v730
    %937 = vmatpush1.bf16.msra.mxu0 %v729
    %938 = vmatprep.subr.bf16.mxu0 %v734
    %939 = vmatpush1.bf16.msra.mxu0 %v733
    %940 = vmatprep.mubr.bf16.mxu0 %v74
    %941 = vmatmul.mubr.bf16.gmra.mrb[0].mxu0 %v73
    %v942 = vpop.f32.mrb[0].mxu0
    %v943 = vadd.f32 %v900, %v942
    %v944 = vpop.f32.mrb[0].mxu0
    %v945 = vadd.f32 %v902, %v944
    %v946 = vpop.f32.mrb[0].mxu0
    %v947 = vadd.f32 %v904, %v946
    %v948 = vpop.f32.mrb[0].mxu0
    %v949 = vadd.f32 %v906, %v948
    %950 = vdwg.mxu0
    %951 = vmatprep.subr.bf16.mxu0 %v612
    %952 = vmatpush1.bf16.msra.mxu0 %v611
    %953 = vmatprep.subr.bf16.mxu0 %v616
    %954 = vmatpush1.bf16.msra.mxu0 %v615
    %955 = vmatprep.subr.bf16.mxu0 %v620
    %956 = vmatpush1.bf16.msra.mxu0 %v619
    %957 = vmatprep.subr.bf16.mxu0 %v624
    %958 = vmatpush1.bf16.msra.mxu0 %v623
    %959 = vmatprep.subr.bf16.mxu0 %v628
    %960 = vmatpush1.bf16.msra.mxu0 %v627
    %961 = vmatprep.subr.bf16.mxu0 %v632
    %962 = vmatpush1.bf16.msra.mxu0 %v631
    %963 = vmatprep.subr.bf16.mxu0 %v636
    %964 = vmatpush1.bf16.msra.mxu0 %v635
    %965 = vmatprep.subr.bf16.mxu0 %v640
    %966 = vmatpush1.bf16.msra.mxu0 %v639
    %967 = vmatprep.subr.bf16.mxu0 %v644
    %968 = vmatpush1.bf16.msra.mxu0 %v643
    %969 = vmatprep.subr.bf16.mxu0 %v648
    %970 = vmatpush1.bf16.msra.mxu0 %v647
    %971 = vmatprep.subr.bf16.mxu0 %v652
    %972 = vmatpush1.bf16.msra.mxu0 %v651
    %973 = vmatprep.subr.bf16.mxu0 %v656
    %974 = vmatpush1.bf16.msra.mxu0 %v655
    %975 = vmatprep.subr.bf16.mxu0 %v660
    %976 = vmatpush1.bf16.msra.mxu0 %v659
    %977 = vmatprep.subr.bf16.mxu0 %v664
    %978 = vmatpush1.bf16.msra.mxu0 %v663
    %979 = vmatprep.subr.bf16.mxu0 %v668
    %980 = vmatpush1.bf16.msra.mxu0 %v667
    %981 = vmatprep.subr.bf16.mxu0 %v672
    %982 = vmatpush1.bf16.msra.mxu0 %v671
    %983 = vmatprep.mubr.bf16.mxu0 %v72
    %984 = vmatmul.mubr.bf16.gmra.mrb[0].mxu0 %v71
    %v985 = vpop.f32.mrb[0].mxu0
    %v986 = vadd.f32 %v216, %v985
    %v987 = vpop.f32.mrb[0].mxu0
    %v988 = vadd.f32 %v220, %v987
    %v989 = vpop.f32.mrb[0].mxu0
    %v990 = vadd.f32 %v216, %v989
    %v991 = vpop.f32.mrb[0].mxu0
    %v992 = vadd.f32 %v220, %v991
    %993 = vdwg.mxu0
    %994 = vmatprep.subr.bf16.mxu0 %v676
    %995 = vmatpush1.bf16.msra.mxu0 %v675
    %996 = vmatprep.subr.bf16.mxu0 %v680
    %997 = vmatpush1.bf16.msra.mxu0 %v679
    %998 = vmatprep.subr.bf16.mxu0 %v684
    %999 = vmatpush1.bf16.msra.mxu0 %v683
    %1000 = vmatprep.subr.bf16.mxu0 %v688
    %1001 = vmatpush1.bf16.msra.mxu0 %v687
    %1002 = vmatprep.subr.bf16.mxu0 %v692
    %1003 = vmatpush1.bf16.msra.mxu0 %v691
    %1004 = vmatprep.subr.bf16.mxu0 %v696
    %1005 = vmatpush1.bf16.msra.mxu0 %v695
    %1006 = vmatprep.subr.bf16.mxu0 %v700
    %1007 = vmatpush1.bf16.msra.mxu0 %v699
    %1008 = vmatprep.subr.bf16.mxu0 %v704
    %1009 = vmatpush1.bf16.msra.mxu0 %v703
    %1010 = vmatprep.subr.bf16.mxu0 %v708
    %1011 = vmatpush1.bf16.msra.mxu0 %v707
    %1012 = vmatprep.subr.bf16.mxu0 %v712
    %1013 = vmatpush1.bf16.msra.mxu0 %v711
    %1014 = vmatprep.subr.bf16.mxu0 %v716
    %1015 = vmatpush1.bf16.msra.mxu0 %v715
    %1016 = vmatprep.subr.bf16.mxu0 %v720
    %1017 = vmatpush1.bf16.msra.mxu0 %v719
    %1018 = vmatprep.subr.bf16.mxu0 %v724
    %1019 = vmatpush1.bf16.msra.mxu0 %v723
    %1020 = vmatprep.subr.bf16.mxu0 %v728
    %1021 = vmatpush1.bf16.msra.mxu0 %v727
    %1022 = vmatprep.subr.bf16.mxu0 %v732
    %1023 = vmatpush1.bf16.msra.mxu0 %v731
    %1024 = vmatprep.subr.bf16.mxu0 %v736
    %1025 = vmatpush1.bf16.msra.mxu0 %v735
    %1026 = vmatprep.mubr.bf16.mxu0 %v74
    %1027 = vmatmul.mubr.bf16.gmra.mrb[0].mxu0 %v73
    %v1028 = vpop.f32.mrb[0].mxu0
    %v1029 = vadd.f32 %v986, %v1028
    %v1030 = vpop.f32.mrb[0].mxu0
    %v1031 = vadd.f32 %v988, %v1030
    %v1032 = vpop.f32.mrb[0].mxu0
    %v1033 = vadd.f32 %v990, %v1032
    %v1034 = vpop.f32.mrb[0].mxu0
    %v1035 = vadd.f32 %v992, %v1034
    %1036 = vdwg.mxu0
    %v1037 = vmul.f32 %v943, 0.01
    %v1038 = vmul.f32 %v945, 0.01
    %v1039 = vmul.f32 %v1029, 0.01
    %v1040 = vmul.f32 %v1031, 0.01
    %v1041 = vmul.f32 %v947, 0.01
    %v1042 = vmul.f32 %v949, 0.01
    %v1043 = vmul.f32 %v1033, 0.01
    %v1044 = vmul.f32 %v1035, 0.01
    %v1045 = vmax.f32 %v943, %v1037
    %v1046 = vmax.f32 %v945, %v1038
    %v1047 = vmax.f32 %v1029, %v1039
    %v1048 = vmax.f32 %v1031, %v1040
    %v1049 = vmax.f32 %v947, %v1041
    %v1050 = vmax.f32 %v949, %v1042
    %v1051 = vmax.f32 %v1033, %v1043
    %v1052 = vmax.f32 %v1035, %v1044
    %v1053 = vpack.c.bf16 %v1049, %v1045
    %v1054 = vpack.c.bf16 %v1050, %v1046
    %v1055 = vpack.c.bf16 %v1051, %v1047
    %v1056 = vpack.c.bf16 %v1052, %v1048
    %v1057 = vld [vmem:[#allocation7] sm:$0xf]
    %v1058 = vld [vmem:[#allocation7 + $0x4] sm:$0xf]
    %v1059 = vld [vmem:[#allocation7 + $0x8] sm:$0xf]
    %v1060 = vld [vmem:[#allocation7 + $0xc] sm:$0xf]
    %v1061 = vld [vmem:[#allocation7 + $0x10] sm:$0xf]
    %v1062 = vld [vmem:[#allocation7 + $0x14] sm:$0xf]
    %v1063 = vld [vmem:[#allocation7 + $0x18] sm:$0xf]
    %v1064 = vld [vmem:[#allocation7 + $0x1c] sm:$0xf]
    %v1065 = vld [vmem:[#allocation7 + $0x20] sm:$0xf]
    %v1066 = vld [vmem:[#allocation7 + $0x24] sm:$0xf]
    %v1067 = vld [vmem:[#allocation7 + $0x28] sm:$0xf]
    %v1068 = vld [vmem:[#allocation7 + $0x2c] sm:$0xf]
    %v1069 = vld [vmem:[#allocation7 + $0x30] sm:$0xf]
    %v1070 = vld [vmem:[#allocation7 + $0x34] sm:$0xf]
    %v1071 = vld [vmem:[#allocation7 + $0x38] sm:$0xf]
    %v1072 = vld [vmem:[#allocation7 + $0x3c] sm:$0xf]
    %v1073 = vld [vmem:[#allocation7 + $0x40] sm:$0xf]
    %v1074 = vld [vmem:[#allocation7 + $0x44] sm:$0xf]
    %v1075 = vld [vmem:[#allocation7 + $0x48] sm:$0xf]
    %v1076 = vld [vmem:[#allocation7 + $0x4c] sm:$0xf]
    %v1077 = vld [vmem:[#allocation7 + $0x50] sm:$0xf]
    %v1078 = vld [vmem:[#allocation7 + $0x54] sm:$0xf]
    %v1079 = vld [vmem:[#allocation7 + $0x58] sm:$0xf]
    %v1080 = vld [vmem:[#allocation7 + $0x5c] sm:$0xf]
    %v1081 = vld [vmem:[#allocation7 + $0x60] sm:$0xf]
    %v1082 = vld [vmem:[#allocation7 + $0x64] sm:$0xf]
    %v1083 = vld [vmem:[#allocation7 + $0x68] sm:$0xf]
    %v1084 = vld [vmem:[#allocation7 + $0x6c] sm:$0xf]
    %v1085 = vld [vmem:[#allocation7 + $0x70] sm:$0xf]
    %v1086 = vld [vmem:[#allocation7 + $0x74] sm:$0xf]
    %v1087 = vld [vmem:[#allocation7 + $0x78] sm:$0xf]
    %v1088 = vld [vmem:[#allocation7 + $0x7c] sm:$0xf]
    %v1089 = vld [vmem:[#allocation7 + $0x80] sm:$0xf]
    %v1090 = vld [vmem:[#allocation7 + $0x84] sm:$0xf]
    %v1091 = vld [vmem:[#allocation7 + $0x88] sm:$0xf]
    %v1092 = vld [vmem:[#allocation7 + $0x8c] sm:$0xf]
    %v1093 = vld [vmem:[#allocation7 + $0x90] sm:$0xf]
    %v1094 = vld [vmem:[#allocation7 + $0x94] sm:$0xf]
    %v1095 = vld [vmem:[#allocation7 + $0x98] sm:$0xf]
    %v1096 = vld [vmem:[#allocation7 + $0x9c] sm:$0xf]
    %v1097 = vld [vmem:[#allocation7 + $0xa0] sm:$0xf]
    %v1098 = vld [vmem:[#allocation7 + $0xa4] sm:$0xf]
    %v1099 = vld [vmem:[#allocation7 + $0xa8] sm:$0xf]
    %v1100 = vld [vmem:[#allocation7 + $0xac] sm:$0xf]
    %v1101 = vld [vmem:[#allocation7 + $0xb0] sm:$0xf]
    %v1102 = vld [vmem:[#allocation7 + $0xb4] sm:$0xf]
    %v1103 = vld [vmem:[#allocation7 + $0xb8] sm:$0xf]
    %v1104 = vld [vmem:[#allocation7 + $0xbc] sm:$0xf]
    %v1105 = vld [vmem:[#allocation7 + $0xc0] sm:$0xf]
    %v1106 = vld [vmem:[#allocation7 + $0xc4] sm:$0xf]
    %v1107 = vld [vmem:[#allocation7 + $0xc8] sm:$0xf]
    %v1108 = vld [vmem:[#allocation7 + $0xcc] sm:$0xf]
    %v1109 = vld [vmem:[#allocation7 + $0xd0] sm:$0xf]
    %v1110 = vld [vmem:[#allocation7 + $0xd4] sm:$0xf]
    %v1111 = vld [vmem:[#allocation7 + $0xd8] sm:$0xf]
    %v1112 = vld [vmem:[#allocation7 + $0xdc] sm:$0xf]
    %v1113 = vld [vmem:[#allocation7 + $0xe0] sm:$0xf]
    %v1114 = vld [vmem:[#allocation7 + $0xe4] sm:$0xf]
    %v1115 = vld [vmem:[#allocation7 + $0xe8] sm:$0xf]
    %v1116 = vld [vmem:[#allocation7 + $0xec] sm:$0xf]
    %v1117 = vld [vmem:[#allocation7 + $0xf0] sm:$0xf]
    %v1118 = vld [vmem:[#allocation7 + $0xf4] sm:$0xf]
    %v1119 = vld [vmem:[#allocation7 + $0xf8] sm:$0xf]
    %v1120 = vld [vmem:[#allocation7 + $0xfc] sm:$0xf]
    %v1121 = vld [vmem:[%s4] sm:$0x1]
    %v1123 = vlaneseq
    %v1124 = vshrl.u32 %v1123, 7
    %v1125 = vsub.s32 0, %v1124
    %v1126 = vrot.slane %v1121, %v1125
    %v1192 = vunpack.c.l.b16 %v1057
    %v1193 = vunpack.c.l.b16 %v1058
    %v1194 = vunpack.c.l.b16 %v1059
    %v1195 = vunpack.c.l.b16 %v1060
    %v1196 = vunpack.c.l.b16 %v1061
    %v1197 = vunpack.c.l.b16 %v1062
    %v1198 = vunpack.c.l.b16 %v1063
    %v1199 = vunpack.c.l.b16 %v1064
    %v1200 = vunpack.c.l.b16 %v1065
    %v1201 = vunpack.c.l.b16 %v1066
    %v1202 = vunpack.c.l.b16 %v1067
    %v1203 = vunpack.c.l.b16 %v1068
    %v1204 = vunpack.c.l.b16 %v1069
    %v1205 = vunpack.c.l.b16 %v1070
    %v1206 = vunpack.c.l.b16 %v1071
    %v1207 = vunpack.c.l.b16 %v1072
    %v1208 = vunpack.c.l.b16 %v1073
    %v1209 = vunpack.c.l.b16 %v1074
    %v1210 = vunpack.c.l.b16 %v1075
    %v1211 = vunpack.c.l.b16 %v1076
    %v1212 = vunpack.c.l.b16 %v1077
    %v1213 = vunpack.c.l.b16 %v1078
    %v1214 = vunpack.c.l.b16 %v1079
    %v1215 = vunpack.c.l.b16 %v1080
    %v1216 = vunpack.c.l.b16 %v1081
    %v1217 = vunpack.c.l.b16 %v1082
    %v1218 = vunpack.c.l.b16 %v1083
    %v1219 = vunpack.c.l.b16 %v1084
    %v1220 = vunpack.c.l.b16 %v1085
    %v1221 = vunpack.c.l.b16 %v1086
    %v1222 = vunpack.c.l.b16 %v1087
    %v1223 = vunpack.c.l.b16 %v1088
    %v1224 = vunpack.c.l.b16 %v1089
    %v1225 = vunpack.c.l.b16 %v1090
    %v1226 = vunpack.c.l.b16 %v1091
    %v1227 = vunpack.c.l.b16 %v1092
    %v1228 = vunpack.c.l.b16 %v1093
    %v1229 = vunpack.c.l.b16 %v1094
    %v1230 = vunpack.c.l.b16 %v1095
    %v1231 = vunpack.c.l.b16 %v1096
    %v1232 = vunpack.c.l.b16 %v1097
    %v1233 = vunpack.c.l.b16 %v1098
    %v1234 = vunpack.c.l.b16 %v1099
    %v1235 = vunpack.c.l.b16 %v1100
    %v1236 = vunpack.c.l.b16 %v1101
    %v1237 = vunpack.c.l.b16 %v1102
    %v1238 = vunpack.c.l.b16 %v1103
    %v1239 = vunpack.c.l.b16 %v1104
    %v1240 = vunpack.c.l.b16 %v1105
    %v1241 = vunpack.c.l.b16 %v1106
    %v1242 = vunpack.c.l.b16 %v1107
    %v1243 = vunpack.c.l.b16 %v1108
    %v1244 = vunpack.c.l.b16 %v1109
    %v1245 = vunpack.c.l.b16 %v1110
    %v1246 = vunpack.c.l.b16 %v1111
    %v1247 = vunpack.c.l.b16 %v1112
    %v1248 = vunpack.c.l.b16 %v1113
    %v1249 = vunpack.c.l.b16 %v1114
    %v1250 = vunpack.c.l.b16 %v1115
    %v1251 = vunpack.c.l.b16 %v1116
    %v1252 = vunpack.c.l.b16 %v1117
    %v1253 = vunpack.c.l.b16 %v1118
    %v1254 = vunpack.c.l.b16 %v1119
    %v1255 = vunpack.c.l.b16 %v1120
    %v1256 = vpack.c.b16 %v1193, %v1192
    %v1257 = vpack.c.b16 %v1195, %v1194
    %v1258 = vpack.c.b16 %v1197, %v1196
    %v1259 = vpack.c.b16 %v1199, %v1198
    %v1260 = vpack.c.b16 %v1201, %v1200
    %v1261 = vpack.c.b16 %v1203, %v1202
    %v1262 = vpack.c.b16 %v1205, %v1204
    %v1263 = vpack.c.b16 %v1207, %v1206
    %v1264 = vpack.c.b16 %v1209, %v1208
    %v1265 = vpack.c.b16 %v1211, %v1210
    %v1266 = vpack.c.b16 %v1213, %v1212
    %v1267 = vpack.c.b16 %v1215, %v1214
    %v1268 = vpack.c.b16 %v1217, %v1216
    %v1269 = vpack.c.b16 %v1219, %v1218
    %v1270 = vpack.c.b16 %v1221, %v1220
    %v1271 = vpack.c.b16 %v1223, %v1222
    %v1272 = vpack.c.b16 %v1225, %v1224
    %v1273 = vpack.c.b16 %v1227, %v1226
    %v1274 = vpack.c.b16 %v1229, %v1228
    %v1275 = vpack.c.b16 %v1231, %v1230
    %v1276 = vpack.c.b16 %v1233, %v1232
    %v1277 = vpack.c.b16 %v1235, %v1234
    %v1278 = vpack.c.b16 %v1237, %v1236
    %v1279 = vpack.c.b16 %v1239, %v1238
    %v1280 = vpack.c.b16 %v1241, %v1240
    %v1281 = vpack.c.b16 %v1243, %v1242
    %v1282 = vpack.c.b16 %v1245, %v1244
    %v1283 = vpack.c.b16 %v1247, %v1246
    %v1284 = vpack.c.b16 %v1249, %v1248
    %v1285 = vpack.c.b16 %v1251, %v1250
    %v1286 = vpack.c.b16 %v1253, %v1252
    %v1287 = vpack.c.b16 %v1255, %v1254
    %1320 = vmatprep.subr.bf16.mxu0 0
    %1321 = vmatpush1.bf16.msra.mxu0 %v1256
    %1322 = vmatprep.subr.bf16.mxu0 0
    %1323 = vmatpush1.bf16.msra.mxu0 %v1257
    %1324 = vmatprep.subr.bf16.mxu0 0
    %1325 = vmatpush1.bf16.msra.mxu0 %v1258
    %1326 = vmatprep.subr.bf16.mxu0 0
    %1327 = vmatpush1.bf16.msra.mxu0 %v1259
    %1328 = vmatprep.subr.bf16.mxu0 0
    %1329 = vmatpush1.bf16.msra.mxu0 %v1260
    %1330 = vmatprep.subr.bf16.mxu0 0
    %1331 = vmatpush1.bf16.msra.mxu0 %v1261
    %1332 = vmatprep.subr.bf16.mxu0 0
    %1333 = vmatpush1.bf16.msra.mxu0 %v1262
    %1334 = vmatprep.subr.bf16.mxu0 0
    %1335 = vmatpush1.bf16.msra.mxu0 %v1263
    %1336 = vmatprep.subr.bf16.mxu0 0
    %1337 = vmatpush1.bf16.msra.mxu0 %v1264
    %1338 = vmatprep.subr.bf16.mxu0 0
    %1339 = vmatpush1.bf16.msra.mxu0 %v1265
    %1340 = vmatprep.subr.bf16.mxu0 0
    %1341 = vmatpush1.bf16.msra.mxu0 %v1266
    %1342 = vmatprep.subr.bf16.mxu0 0
    %1343 = vmatpush1.bf16.msra.mxu0 %v1267
    %1344 = vmatprep.subr.bf16.mxu0 0
    %1345 = vmatpush1.bf16.msra.mxu0 %v1268
    %1346 = vmatprep.subr.bf16.mxu0 0
    %1347 = vmatpush1.bf16.msra.mxu0 %v1269
    %1348 = vmatprep.subr.bf16.mxu0 0
    %1349 = vmatpush1.bf16.msra.mxu0 %v1270
    %1350 = vmatprep.subr.bf16.mxu0 0
    %1351 = vmatpush1.bf16.msra.mxu0 %v1271
    %1352 = vmatprep.mubr.bf16.mxu0 %v1054
    %1353 = vmatmul.mubr.bf16.gmra.mrb[0].mxu0 %v1053
    %v1354 = vpop.f32.mrb[0].mxu0
    %v1355 = vadd.f32 %v1126, %v1354
    %v1356 = vpop.f32.mrb[0].mxu0
    %v1357 = vpop.f32.mrb[0].mxu0
    %v1358 = vadd.f32 %v1126, %v1357
    %v1359 = vpop.f32.mrb[0].mxu0
    %1360 = vdwg.mxu0
    %1361 = vmatprep.subr.bf16.mxu0 0
    %1362 = vmatpush1.bf16.msra.mxu0 %v1272
    %1363 = vmatprep.subr.bf16.mxu0 0
    %1364 = vmatpush1.bf16.msra.mxu0 %v1273
    %1365 = vmatprep.subr.bf16.mxu0 0
    %1366 = vmatpush1.bf16.msra.mxu0 %v1274
    %1367 = vmatprep.subr.bf16.mxu0 0
    %1368 = vmatpush1.bf16.msra.mxu0 %v1275
    %1369 = vmatprep.subr.bf16.mxu0 0
    %1370 = vmatpush1.bf16.msra.mxu0 %v1276
    %1371 = vmatprep.subr.bf16.mxu0 0
    %1372 = vmatpush1.bf16.msra.mxu0 %v1277
    %1373 = vmatprep.subr.bf16.mxu0 0
    %1374 = vmatpush1.bf16.msra.mxu0 %v1278
    %1375 = vmatprep.subr.bf16.mxu0 0
    %1376 = vmatpush1.bf16.msra.mxu0 %v1279
    %1377 = vmatprep.subr.bf16.mxu0 0
    %1378 = vmatpush1.bf16.msra.mxu0 %v1280
    %1379 = vmatprep.subr.bf16.mxu0 0
    %1380 = vmatpush1.bf16.msra.mxu0 %v1281
    %1381 = vmatprep.subr.bf16.mxu0 0
    %1382 = vmatpush1.bf16.msra.mxu0 %v1282
    %1383 = vmatprep.subr.bf16.mxu0 0
    %1384 = vmatpush1.bf16.msra.mxu0 %v1283
    %1385 = vmatprep.subr.bf16.mxu0 0
    %1386 = vmatpush1.bf16.msra.mxu0 %v1284
    %1387 = vmatprep.subr.bf16.mxu0 0
    %1388 = vmatpush1.bf16.msra.mxu0 %v1285
    %1389 = vmatprep.subr.bf16.mxu0 0
    %1390 = vmatpush1.bf16.msra.mxu0 %v1286
    %1391 = vmatprep.subr.bf16.mxu0 0
    %1392 = vmatpush1.bf16.msra.mxu0 %v1287
    %1393 = vmatprep.mubr.bf16.mxu0 %v1056
    %1394 = vmatmul.mubr.bf16.gmra.mrb[0].mxu0 %v1055
    %v1395 = vpop.f32.mrb[0].mxu0
    %v1396 = vadd.f32 %v1355, %v1395
    %v1397 = vpop.f32.mrb[0].mxu0
    %v1398 = vpop.f32.mrb[0].mxu0
    %v1399 = vadd.f32 %v1358, %v1398
    %v1400 = vpop.f32.mrb[0].mxu0
    %1401 = vdwg.mxu0
    %v1402 = vpack.c.bf16 %v1399, %v1396
    %v1404 = vunpack.c.l.b16 %v1402
    %v1405 = vunpack.c.h.b16 %v1402
    %v1406 = vpack.c.b16 %v1404, %v1404
    %v1407 = vpack.c.b16 %v1405, %v1405
    %1410 = vst [vmem:[#allocation8] sm:$0xf] %v1406
    %1411 = vst [vmem:[#allocation8 + $0x4] sm:$0xf] %v1407
    // Predicated region
    $region34: #{tpu_custom_call.1} parent=1 // pred_check
      _
    $region35: #{tpu_custom_call.1} parent=1 // pred_check_branch
      %1413 = sbr.rel (0) target = $region37
    $region36: #{tpu_custom_call.1} parent=1 // pred_region
      %s1415 = ssub.s32 128, 128
      %1416 = vsyncadd [#allocation4], %s1415
      %s1417 = sshll.u32 [#allocation8], 4
      %s1418 = int_to_ptr.vmem [resolvable:$true] %s1417
      %1423 = dma.vmem_to_hbm [thread:$0]  %s1418, 128, %s5, [#allocation4], 64, 64, 4
    $region37: #{tpu_custom_call.1} parent=1 // pred_fallthru
      _
    // Predicated region
    $region38: #{tpu_custom_call.1} parent=1 // pred_check
      _
    $region39: #{tpu_custom_call.1} parent=1 // pred_check_branch
      %1425 = sbr.rel (0) target = $region41
    $region40: #{tpu_custom_call.1} parent=1 // pred_region
      %1426 = dma.done [#allocation4], 128
    $region41: #{tpu_custom_call.1} parent=1 // pred_fallthru
      _
    %1427 = vsyncpa [#allocation3], 1
    %1428 = vsyncpa [#allocation6], 1
    %1429 = vsyncpa [#allocation4], 1

</llo_original>
